<compile_context>
chip_gen: v7x
topology: tpu7x:2x2x1
jax: 0.10.0
libtpu: 0.0.40
codegen_flags: <defaults>
</compile_context>

<pallas_src>
import functools

import jax
import jax.numpy as jnp
from jax import lax
from jax.experimental import pallas as pl
from jax.experimental.pallas import tpu as pltpu
import numpy as np

LANE = 128


def causal_conv_kernel(x_ref, w1_ref, w2_ref, w3_ref, w4_ref, b_ref, out_ref,
                       *, L, C1, C2):
    h = x_ref[...]                                   # (B*L, Cin) float32
    BL = h.shape[0]
    row = lax.broadcasted_iota(jnp.int32, (BL, 1), 0)
    at_batch_start = (row % L) == 0                  # every batch boundary

    biases = b_ref[...]                              # (4, 128), zero-padded rows

    def layer(h, w_ref, bias, apply_relu):
        # h[t-1] with zeros at each batch's first row (causal, no cross-batch leak).
        shifted = jnp.where(at_batch_start, 0.0, pltpu.roll(h, shift=1, axis=0))
        h2 = jnp.concatenate([shifted, h], axis=-1)  # (BL, 2*Cin)
        y = jnp.dot(h2, w_ref[...], preferred_element_type=jnp.float32) + bias
        if apply_relu:
            y = jnp.maximum(y, 0.0)
        return y

    h = layer(h, w1_ref, biases[0:1, :C1], True)
    h = layer(h, w2_ref, biases[1:2, :C1], True)
    h = layer(h, w3_ref, biases[2:3, :C2], True)
    # Last layer: weights & bias are padded to 128 output lanes -> lane-dense store.
    h = layer(h, w4_ref, biases[3:4, :], False)      # conv4 has no ReLU
    out_ref[...] = h.astype(out_ref.dtype)


def _stack_taps(W, pad_cout_to=None):
    # W: (Cout, Cin, 2) -> (2*Cin, Cout); rows [0:Cin) multiply x[t-1] (tap k=0),
    # rows [Cin:2*Cin) multiply x[t] (tap k=1).
    w = jnp.concatenate([W[:, :, 0].T, W[:, :, 1].T], axis=0)
    if pad_cout_to is not None and pad_cout_to > w.shape[1]:
        w = jnp.pad(w, ((0, 0), (0, pad_cout_to - w.shape[1])))
    return w.astype(jnp.float32)


def causal_conv_pallas(x_ncl, params):
    """x_ncl: (B, Cin, L) float32.  params: list of (W (Cout,Cin,2), b (Cout,))."""
    B, Cin, L = x_ncl.shape
    C1 = params[0][0].shape[0]
    C2 = params[3][0].shape[0]

    # (B, Cin, L) -> (B*L, Cin): channels on lanes, batch*time on sublanes.
    x_flat = jnp.transpose(x_ncl, (0, 2, 1)).reshape(B * L, Cin)

    w1 = _stack_taps(params[0][0])                   # (2*Cin, C1)
    w2 = _stack_taps(params[1][0])                   # (2*C1,  C1)
    w3 = _stack_taps(params[2][0])                   # (2*C1,  C2)
    w4 = _stack_taps(params[3][0], pad_cout_to=LANE) # (2*C2, 128) lane-dense out

    bias_pack = jnp.stack(
        [jnp.pad(params[i][1], (0, LANE - params[i][1].shape[0]))
         for i in range(4)], axis=0).astype(jnp.float32)      # (4, 128)

    kernel = functools.partial(causal_conv_kernel, L=L, C1=C1, C2=C2)
    vmem_spec = pl.BlockSpec(memory_space=pltpu.MemorySpace.VMEM)

    out = pl.pallas_call(
        kernel,
        out_shape=jax.ShapeDtypeStruct((B * L, LANE), jnp.float32),
        in_specs=[vmem_spec] * 6,
        out_specs=vmem_spec,
    )(x_flat, w1, w2, w3, w4, bias_pack)

    # Drop the lane padding and return NCL: (B, C2, L).
    out = out[:, :C2].reshape(B, L, C2)
    return jnp.transpose(out, (0, 2, 1))


def causal_conv_ref(x_ncl, params):
    """Pure-JAX reference matching the PyTorch module exactly."""
    h = x_ncl
    for idx, (W, b) in enumerate(params):
        hp = jnp.pad(h, ((0, 0), (0, 0), (1, 0)))            # left pad by 1
        y = (jnp.einsum('oi,bit->bot', W[:, :, 0], hp[:, :, :-1])
             + jnp.einsum('oi,bit->bot', W[:, :, 1], h)
             + b[None, :, None])
        if idx < 3:
            y = jnp.maximum(y, 0.0)
        h = y
    return h


def make_params(key, num_inputs=4, c1=32, c2=64):
    hidden = [c1, c1, c2, c2]
    in_chans = [num_inputs, c1, c1, c2]
    params = []
    for cin, cout in zip(in_chans, hidden):
        kw, kb, key = jax.random.split(key, 3)
        scale = 1.0 / np.sqrt(cin * 2)
        W = jax.random.normal(kw, (cout, cin, 2), jnp.float32) * scale
        b = jax.random.normal(kb, (cout,), jnp.float32) * scale
        params.append((W, b))
    return params


if __name__ == "__main__":
    key = jax.random.PRNGKey(0)
    kx, kp = jax.random.split(key)

    B, C, L = 2, 4, 16                       # (batch, num_inputs, num_step_past)
    x = jax.random.normal(kx, (B, C, L), jnp.float32)
    params = make_params(kp, num_inputs=C, c1=32, c2=64)

    out = causal_conv_pallas(x, params)
    out = jax.block_until_ready(out)

    ref = causal_conv_ref(x, params)
    np.testing.assert_allclose(np.asarray(out), np.asarray(ref), rtol=1e-5, atol=1e-5)
    assert out.shape == (B, 64, L)

    print("KERNEL_OK")
</pallas_src>

<mosaic_0001>
module attributes {stable_mosaic.version = 11 : i64} {
  func.func @causal_conv_kernel(%arg0: memref<32x4xf32, #tpu.memory_space<vmem>>, %arg1: memref<8x32xf32, #tpu.memory_space<vmem>>, %arg2: memref<64x32xf32, #tpu.memory_space<vmem>>, %arg3: memref<64x64xf32, #tpu.memory_space<vmem>>, %arg4: memref<128x128xf32, #tpu.memory_space<vmem>>, %arg5: memref<4x128xf32, #tpu.memory_space<vmem>>, %arg6: memref<32x128xf32, #tpu.memory_space<vmem>>) attributes {dimension_semantics = [], scalar_prefetch = 0 : i64, scratch_operands = 0 : i64, tpu.core_type = #tpu.core_type<tc>} {
    %c0 = arith.constant 0 : index
    %c0_0 = arith.constant 0 : index
    %0 = vector.load %arg0[%c0, %c0_0] : memref<32x4xf32, #tpu.memory_space<vmem>>, vector<32x4xf32>
    %1 = tpu.iota {dimensions = array<i32: 0>} : vector<32x1xi32>
    %c16_i32 = arith.constant 16 : i32
    %c0_i32 = arith.constant 0 : i32
    %2 = arith.cmpi eq, %c16_i32, %c0_i32 : i32
    %c1_i32 = arith.constant 1 : i32
    %3 = arith.select %2, %c1_i32, %c16_i32 : i32
    %4 = vector.broadcast %3 : i32 to vector<32x1xi32>
    %5 = arith.remsi %1, %4 : vector<32x1xi32>
    %c0_i32_1 = arith.constant 0 : i32
    %6 = vector.broadcast %c0_i32_1 : i32 to vector<32x1xi32>
    %7 = arith.cmpi ne, %5, %6 : vector<32x1xi32>
    %c0_i32_2 = arith.constant 0 : i32
    %8 = vector.broadcast %c0_i32_2 : i32 to vector<32x1xi32>
    %9 = arith.cmpi slt, %5, %8 : vector<32x1xi32>
    %c0_i32_3 = arith.constant 0 : i32
    %10 = arith.cmpi slt, %3, %c0_i32_3 : i32
    %11 = vector.broadcast %10 : i1 to vector<32x1xi1>
    %12 = vector.broadcast %11 : vector<32x1xi1> to vector<32x1xi1>
    %13 = arith.xori %9, %12 : vector<32x1xi1>
    %14 = arith.andi %13, %7 : vector<32x1xi1>
    %15 = vector.broadcast %3 : i32 to vector<32x1xi32>
    %16 = arith.addi %5, %15 : vector<32x1xi32>
    %17 = arith.select %14, %16, %5 : vector<32x1xi1>, vector<32x1xi32>
    %c0_i32_4 = arith.constant 0 : i32
    %18 = vector.broadcast %c0_i32_4 : i32 to vector<32x1xi32>
    %19 = arith.cmpi eq, %17, %18 : vector<32x1xi32>
    %c0_5 = arith.constant 0 : index
    %c0_6 = arith.constant 0 : index
    %20 = vector.load %arg5[%c0_5, %c0_6] : memref<4x128xf32, #tpu.memory_space<vmem>>, vector<4x128xf32>
    %21 = vector.extract_strided_slice %20 {offsets = [0, 0], sizes = [1, 32], strides = [1, 1]} : vector<4x128xf32> to vector<1x32xf32>
    %c1_i32_7 = arith.constant 1 : i32
    %22 = tpu.dynamic_rotate %0 by %c1_i32_7 dim 0 : vector<32x4xf32>, i32 -> vector<32x4xf32>
    %cst = arith.constant 0.000000e+00 : f32
    %23 = vector.shape_cast %19 : vector<32x1xi1> to vector<32x1xi1>
    %24 = vector.broadcast %23 : vector<32x1xi1> to vector<32x4xi1>
    %25 = vector.broadcast %cst : f32 to vector<32x4xf32>
    %26 = arith.select %24, %25, %22 : vector<32x4xi1>, vector<32x4xf32>
    %27 = tpu.concatenate %26, %0 in 1 : vector<32x4xf32>, vector<32x4xf32> -> vector<32x8xf32>
    %c0_8 = arith.constant 0 : index
    %c0_9 = arith.constant 0 : index
    %28 = vector.load %arg1[%c0_8, %c0_9] : memref<8x32xf32, #tpu.memory_space<vmem>>, vector<8x32xf32>
    %cst_10 = arith.constant dense<0.000000e+00> : vector<32x32xf32>
    %29 = tpu.matmul %27, %28, %cst_10 {dimension_numbers = #tpu.dot_dimension_numbers<[1], [0], [0], [1], [0, 0, 1, 1], [], []>} : vector<32x8xf32>, vector<8x32xf32>, vector<32x32xf32> -> vector<32x32xf32>
    %30 = vector.broadcast %21 : vector<1x32xf32> to vector<32x32xf32>
    %31 = arith.addf %29, %30 : vector<32x32xf32>
    %cst_11 = arith.constant 0.000000e+00 : f32
    %32 = vector.broadcast %cst_11 : f32 to vector<32x32xf32>
    %33 = arith.maximumf %31, %32 : vector<32x32xf32>
    %34 = vector.extract_strided_slice %20 {offsets = [1, 0], sizes = [1, 32], strides = [1, 1]} : vector<4x128xf32> to vector<1x32xf32>
    %c1_i32_12 = arith.constant 1 : i32
    %35 = tpu.dynamic_rotate %33 by %c1_i32_12 dim 0 : vector<32x32xf32>, i32 -> vector<32x32xf32>
    %cst_13 = arith.constant 0.000000e+00 : f32
    %36 = vector.shape_cast %19 : vector<32x1xi1> to vector<32x1xi1>
    %37 = vector.broadcast %36 : vector<32x1xi1> to vector<32x32xi1>
    %38 = vector.broadcast %cst_13 : f32 to vector<32x32xf32>
    %39 = arith.select %37, %38, %35 : vector<32x32xi1>, vector<32x32xf32>
    %40 = tpu.concatenate %39, %33 in 1 : vector<32x32xf32>, vector<32x32xf32> -> vector<32x64xf32>
    %c0_14 = arith.constant 0 : index
    %c0_15 = arith.constant 0 : index
    %41 = vector.load %arg2[%c0_14, %c0_15] : memref<64x32xf32, #tpu.memory_space<vmem>>, vector<64x32xf32>
    %cst_16 = arith.constant dense<0.000000e+00> : vector<32x32xf32>
    %42 = tpu.matmul %40, %41, %cst_16 {dimension_numbers = #tpu.dot_dimension_numbers<[1], [0], [0], [1], [0, 0, 1, 1], [], []>} : vector<32x64xf32>, vector<64x32xf32>, vector<32x32xf32> -> vector<32x32xf32>
    %43 = vector.broadcast %34 : vector<1x32xf32> to vector<32x32xf32>
    %44 = arith.addf %42, %43 : vector<32x32xf32>
    %cst_17 = arith.constant 0.000000e+00 : f32
    %45 = vector.broadcast %cst_17 : f32 to vector<32x32xf32>
    %46 = arith.maximumf %44, %45 : vector<32x32xf32>
    %47 = vector.extract_strided_slice %20 {offsets = [2, 0], sizes = [1, 64], strides = [1, 1]} : vector<4x128xf32> to vector<1x64xf32>
    %c1_i32_18 = arith.constant 1 : i32
    %48 = tpu.dynamic_rotate %46 by %c1_i32_18 dim 0 : vector<32x32xf32>, i32 -> vector<32x32xf32>
    %cst_19 = arith.constant 0.000000e+00 : f32
    %49 = vector.shape_cast %19 : vector<32x1xi1> to vector<32x1xi1>
    %50 = vector.broadcast %49 : vector<32x1xi1> to vector<32x32xi1>
    %51 = vector.broadcast %cst_19 : f32 to vector<32x32xf32>
    %52 = arith.select %50, %51, %48 : vector<32x32xi1>, vector<32x32xf32>
    %53 = tpu.concatenate %52, %46 in 1 : vector<32x32xf32>, vector<32x32xf32> -> vector<32x64xf32>
    %c0_20 = arith.constant 0 : index
    %c0_21 = arith.constant 0 : index
    %54 = vector.load %arg3[%c0_20, %c0_21] : memref<64x64xf32, #tpu.memory_space<vmem>>, vector<64x64xf32>
    %cst_22 = arith.constant dense<0.000000e+00> : vector<32x64xf32>
    %55 = tpu.matmul %53, %54, %cst_22 {dimension_numbers = #tpu.dot_dimension_numbers<[1], [0], [0], [1], [0, 0, 1, 1], [], []>} : vector<32x64xf32>, vector<64x64xf32>, vector<32x64xf32> -> vector<32x64xf32>
    %56 = vector.broadcast %47 : vector<1x64xf32> to vector<32x64xf32>
    %57 = arith.addf %55, %56 : vector<32x64xf32>
    %cst_23 = arith.constant 0.000000e+00 : f32
    %58 = vector.broadcast %cst_23 : f32 to vector<32x64xf32>
    %59 = arith.maximumf %57, %58 : vector<32x64xf32>
    %60 = vector.extract_strided_slice %20 {offsets = [3, 0], sizes = [1, 128], strides = [1, 1]} : vector<4x128xf32> to vector<1x128xf32>
    %c1_i32_24 = arith.constant 1 : i32
    %61 = tpu.dynamic_rotate %59 by %c1_i32_24 dim 0 : vector<32x64xf32>, i32 -> vector<32x64xf32>
    %cst_25 = arith.constant 0.000000e+00 : f32
    %62 = vector.shape_cast %19 : vector<32x1xi1> to vector<32x1xi1>
    %63 = vector.broadcast %62 : vector<32x1xi1> to vector<32x64xi1>
    %64 = vector.broadcast %cst_25 : f32 to vector<32x64xf32>
    %65 = arith.select %63, %64, %61 : vector<32x64xi1>, vector<32x64xf32>
    %66 = tpu.concatenate %65, %59 in 1 : vector<32x64xf32>, vector<32x64xf32> -> vector<32x128xf32>
    %c0_26 = arith.constant 0 : index
    %c0_27 = arith.constant 0 : index
    %67 = vector.load %arg4[%c0_26, %c0_27] : memref<128x128xf32, #tpu.memory_space<vmem>>, vector<128x128xf32>
    %cst_28 = arith.constant dense<0.000000e+00> : vector<32x128xf32>
    %68 = tpu.matmul %66, %67, %cst_28 {dimension_numbers = #tpu.dot_dimension_numbers<[1], [0], [0], [1], [0, 0, 1, 1], [], []>} : vector<32x128xf32>, vector<128x128xf32>, vector<32x128xf32> -> vector<32x128xf32>
    %69 = vector.broadcast %60 : vector<1x128xf32> to vector<32x128xf32>
    %70 = arith.addf %68, %69 : vector<32x128xf32>
    %c0_29 = arith.constant 0 : index
    %c0_30 = arith.constant 0 : index
    %71 = vector.load %arg6[%c0_29, %c0_30] : memref<32x128xf32, #tpu.memory_space<vmem>>, vector<32x128xf32>
    tpu.vector_store %arg6[%c0_29, %c0_30], %70 {strides = array<i32>} : memref<32x128xf32, #tpu.memory_space<vmem>>, vector<32x128xf32>,
    return
  }
}

</mosaic_0001>

<llo_original>
// kernel: tpu_custom_call.1
$region0: #{tpu_custom_call.1}
  #allocation0 [shape = 'u32[]', space=smem, size = 0x4, offset = 0x4, fixed_abs, tag = 'smem constant byte address 0x4 - core index']
  #allocation1 [shape = 'u32[144,128]{1,0:T(1,128)}', space=vmem, size = 0x12000, scoped, tag = 'internal scratch']
  %s0 = inlined_call_operand.vmem [shape: f32[32,4], index: 0, kind: input, shape index: {}]
  %s1 = inlined_call_operand.vmem [shape: f32[8,32], index: 1, kind: input, shape index: {}]
  %s2 = inlined_call_operand.vmem [shape: f32[64,32], index: 2, kind: input, shape index: {}]
  %s3 = inlined_call_operand.hbm [shape: f32[64,64], index: 3, kind: input, shape index: {}]
  %s4 = inlined_call_operand.vmem [shape: f32[128,128], index: 4, kind: input, shape index: {}]
  %s5 = inlined_call_operand.vmem [shape: f32[4,128], index: 5, kind: input, shape index: {}]
  %s6 = inlined_call_operand.hbm [shape: f32[32,128], index: 6, kind: output, shape index: {}]
  %s7 = sld [smem:[#allocation0]]
  $region38: #{tpu_custom_call.1} parent=0
    _
  %s9 = ssub.s32 1, %s7
  %s10 = scalar_select 0, %s9, %s7
  $region1: #{tpu_custom_call.1} parent=0
    #allocation2 [shape = 'u8[32768]{0}', space=vmem, size = 0x8000, scoped, tag = 'input window, operand 3, single buffered']
    #allocation3 [shape = 's32[1]{0}', space=sflag, size = 0x4, scoped, tag = 'scoped memory for tpu_custom_call.1']
    #allocation4 [shape = 's32[1]{0}', space=sflag, size = 0x4, scoped, tag = 'scoped memory for tpu_custom_call.1']
    #allocation5 [shape = 'u8[16384]{0}', space=vmem, size = 0x4000, scoped, tag = 'output window, operand 0, single buffered']
    %11 = vsyncpa [#allocation3], 0
    %12 = vsyncpa [#allocation4], 0
    // Predicated region
    $region2: #{tpu_custom_call.1} parent=1 // pred_check
      _
    $region3: #{tpu_custom_call.1} parent=1 // pred_check_branch
      %14 = sbr.rel (0) target = $region5
    $region4: #{tpu_custom_call.1} parent=1 // pred_region
      _
    $region5: #{tpu_custom_call.1} parent=1 // pred_fallthru
      _
    // Predicated region
    $region6: #{tpu_custom_call.1} parent=1 // pred_check
      _
    $region7: #{tpu_custom_call.1} parent=1 // pred_check_branch
      %16 = sbr.rel (0) target = $region9
    $region8: #{tpu_custom_call.1} parent=1 // pred_region
      _
    $region9: #{tpu_custom_call.1} parent=1 // pred_fallthru
      _
    // Predicated region
    $region10: #{tpu_custom_call.1} parent=1 // pred_check
      _
    $region11: #{tpu_custom_call.1} parent=1 // pred_check_branch
      %18 = sbr.rel (0) target = $region13
    $region12: #{tpu_custom_call.1} parent=1 // pred_region
      _
    $region13: #{tpu_custom_call.1} parent=1 // pred_fallthru
      _
    // Predicated region
    $region14: #{tpu_custom_call.1} parent=1 // pred_check
      _
    $region15: #{tpu_custom_call.1} parent=1 // pred_check_branch
      %20 = sbr.rel (0) target = $region17
    $region16: #{tpu_custom_call.1} parent=1 // pred_region
      %s22 = ssub.s32 1024, 1024
      %23 = vsyncadd [#allocation3], %s22
      %s24 = sshll.u32 [#allocation2], 4
      %s25 = int_to_ptr.vmem [resolvable:$true] %s24
      %30 = dma.hbm_to_vmem [thread:$0]  %s3, 1024, %s25, [#allocation3], 128, 128, 8
    $region17: #{tpu_custom_call.1} parent=1 // pred_fallthru
      _
    // Predicated region
    $region18: #{tpu_custom_call.1} parent=1 // pred_check
      _
    $region19: #{tpu_custom_call.1} parent=1 // pred_check_branch
      %32 = sbr.rel (0) target = $region21
    $region20: #{tpu_custom_call.1} parent=1 // pred_region
      _
    $region21: #{tpu_custom_call.1} parent=1 // pred_fallthru
      _
    // Predicated region
    $region22: #{tpu_custom_call.1} parent=1 // pred_check
      _
    $region23: #{tpu_custom_call.1} parent=1 // pred_check_branch
      %34 = sbr.rel (0) target = $region25
    $region24: #{tpu_custom_call.1} parent=1 // pred_region
      _
    $region25: #{tpu_custom_call.1} parent=1 // pred_fallthru
      _
    // Predicated region
    $region26: #{tpu_custom_call.1} parent=1 // pred_check
      _
    $region27: #{tpu_custom_call.1} parent=1 // pred_check_branch
      %36 = sbr.rel (0) target = $region29
    $region28: #{tpu_custom_call.1} parent=1 // pred_region
      %37 = dma.done [#allocation3], 1024
    $region29: #{tpu_custom_call.1} parent=1 // pred_fallthru
      _
    %v38 = vld [vmem:[%s0] sm:$0xff]
    %v39 = vld [vmem:[%s0 + $0x8] sm:$0xff]
    %v40 = vld [vmem:[%s0 + $0x10] sm:$0xff]
    %v41 = vld [vmem:[%s0 + $0x18] sm:$0xff]
    %v42 = vlaneseq
    %v43 = vshrl.u32 %v42, 7
    %v44 = vadd.s32 %v43, 8
    %v45 = vadd.s32 %v43, 16
    %v46 = vadd.s32 %v43, 24
    %vm47 = vcmp.lt.s32.totalorder %v43, 0
    %v48 = vsub.s32 0, %v43
    %v49 = vsel %vm47, %v48, %v43
    %v50 = vshrl.u32 %v49, 4
    %v51 = vand.u32 %v49, 15
    %v52 = vsub.s32 0, %v51
    %v53 = vsel %vm47, %v52, %v51
    %vm54 = vcmp.lt.s32.totalorder %v44, 0
    %v55 = vsub.s32 0, %v44
    %v56 = vsel %vm54, %v55, %v44
    %v57 = vshrl.u32 %v56, 4
    %v58 = vand.u32 %v56, 15
    %v59 = vsub.s32 0, %v58
    %v60 = vsel %vm54, %v59, %v58
    %vm61 = vcmp.lt.s32.totalorder %v45, 0
    %v62 = vsub.s32 0, %v45
    %v63 = vsel %vm61, %v62, %v45
    %v64 = vshrl.u32 %v63, 4
    %v65 = vand.u32 %v63, 15
    %v66 = vsub.s32 0, %v65
    %v67 = vsel %vm61, %v66, %v65
    %vm68 = vcmp.lt.s32.totalorder %v46, 0
    %v69 = vsub.s32 0, %v46
    %v70 = vsel %vm68, %v69, %v46
    %v71 = vshrl.u32 %v70, 4
    %v72 = vand.u32 %v70, 15
    %v73 = vsub.s32 0, %v72
    %v74 = vsel %vm68, %v73, %v72
    %vm75 = vcmp.ne.s32.totalorder %v53, 0
    %vm76 = vcmp.ne.s32.totalorder %v60, 0
    %vm77 = vcmp.ne.s32.totalorder %v67, 0
    %vm78 = vcmp.ne.s32.totalorder %v74, 0
    %vm79 = vcmp.lt.s32.totalorder %v53, 0
    %vm80 = vcmp.lt.s32.totalorder %v60, 0
    %vm81 = vcmp.lt.s32.totalorder %v67, 0
    %vm82 = vcmp.lt.s32.totalorder %v74, 0
    %vm83 = vmand %vm79, %vm75
    %vm84 = vmand %vm80, %vm76
    %vm85 = vmand %vm81, %vm77
    %vm86 = vmand %vm82, %vm78
    %v87 = vadd.s32 %v53, 16
    %v88 = vadd.s32 %v60, 16
    %v89 = vadd.s32 %v67, 16
    %v90 = vadd.s32 %v74, 16
    %v91 = vsel %vm83, %v87, %v53
    %v92 = vsel %vm84, %v88, %v60
    %v93 = vsel %vm85, %v89, %v67
    %v94 = vsel %vm86, %v90, %v74
    %vm95 = vcmp.eq.s32.totalorder %v91, 0
    %vm96 = vcmp.eq.s32.totalorder %v92, 0
    %vm97 = vcmp.eq.s32.totalorder %v93, 0
    %vm98 = vcmp.eq.s32.totalorder %v94, 0
    %v99 = vld [vmem:[%s5] sm:$0xf]
    %v100 = vrot.slane %v38, 7
    %v101 = vrot.slane %v39, 7
    %v102 = vrot.slane %v40, 7
    %v103 = vrot.slane %v41, 7
    %vm104 = vcmp.lt.s32.totalorder %v43, 1
    %v105 = vsel %vm104, %v102, %v103
    %v106 = vsel %vm104, %v101, %v102
    %v107 = vsel %vm104, %v100, %v101
    %v108 = vsel %vm104, %v103, %v100
    %v109 = vsel %vm95, 1, 0
    %v110 = vsel %vm96, 1, 0
    %v111 = vsel %vm97, 1, 0
    %v112 = vsel %vm98, 1, 0
    %vm113 = vcmp.eq.s32.totalorder %v109, 1
    %vm114 = vcmp.eq.s32.totalorder %v110, 1
    %vm115 = vcmp.eq.s32.totalorder %v111, 1
    %vm116 = vcmp.eq.s32.totalorder %v112, 1
    %v117 = vsel %vm113, 0.0, %v108
    %v118 = vsel %vm114, 0.0, %v107
    %v119 = vsel %vm115, 0.0, %v106
    %v120 = vsel %vm116, 0.0, %v105
    %125 = vrot.lane.b32.xlu0 %v38, 4
    %v126 = vpop.permute.xlu0 %125
    %127 = vrot.lane.b32.xlu0 %v39, 4
    %v128 = vpop.permute.xlu0 %127
    %129 = vrot.lane.b32.xlu0 %v40, 4
    %v130 = vpop.permute.xlu0 %129
    %131 = vrot.lane.b32.xlu0 %v41, 4
    %v132 = vpop.permute.xlu0 %131
    %vm137 = vcmask 31744
    %v138 = vsel %vm137, %v117, %v126
    %v139 = vsel %vm137, %v118, %v128
    %v140 = vsel %vm137, %v119, %v130
    %v141 = vsel %vm137, %v120, %v132
    %v142 = vld [vmem:[%s1] sm:$0xff]
    %v143 = vlaneseq
    %v144 = vshrl.u32 %v143, 7
    %v145 = vsub.s32 0, %v144
    %v146 = vrot.slane %v99, %v145
    %vm147 = vcmask 64512
    %v149 = vsel %vm147, %v138, 0
    %v152 = vsel %vm147, %v139, 0
    %v155 = vsel %vm147, %v140, 0
    %v158 = vsel %vm147, %v141, 0
    %160 = vmatprep.subr.mxu0 0.0
    %161 = vmatpush1.msra.mxu0 %v142
    %162 = vmatprep.subr.mxu0 0.0
    %163 = vmatpush1.msra.mxu0 0.0
    %164 = vmatprep.subr.mxu0 0.0
    %165 = vmatpush1.msra.mxu0 0.0
    %166 = vmatprep.subr.mxu0 0.0
    %167 = vmatpush1.msra.mxu0 0.0
    %168 = vmatprep.subr.mxu0 0.0
    %169 = vmatpush1.msra.mxu0 0.0
    %170 = vmatprep.subr.mxu0 0.0
    %171 = vmatpush1.msra.mxu0 0.0
    %172 = vmatprep.subr.mxu0 0.0
    %173 = vmatpush1.msra.mxu0 0.0
    %174 = vmatprep.subr.mxu0 0.0
    %175 = vmatpush1.msra.mxu0 0.0
    %176 = vmatprep.subr.mxu0 0.0
    %177 = vmatpush1.msra.mxu0 0.0
    %178 = vmatprep.subr.mxu0 0.0
    %179 = vmatpush1.msra.mxu0 0.0
    %180 = vmatprep.subr.mxu0 0.0
    %181 = vmatpush1.msra.mxu0 0.0
    %182 = vmatprep.subr.mxu0 0.0
    %183 = vmatpush1.msra.mxu0 0.0
    %184 = vmatprep.subr.mxu0 0.0
    %185 = vmatpush1.msra.mxu0 0.0
    %186 = vmatprep.subr.mxu0 0.0
    %187 = vmatpush1.msra.mxu0 0.0
    %188 = vmatprep.subr.mxu0 0.0
    %189 = vmatpush1.msra.mxu0 0.0
    %190 = vmatprep.subr.mxu0 0.0
    %191 = vmatpush1.msra.mxu0 0.0
    %192 = vmatprep.subr.mxu0 0.0
    %193 = vmatpush1.msra.mxu0 0.0
    %194 = vmatprep.subr.mxu0 0.0
    %195 = vmatpush1.msra.mxu0 0.0
    %196 = vmatprep.subr.mxu0 0.0
    %197 = vmatpush1.msra.mxu0 0.0
    %198 = vmatprep.subr.mxu0 0.0
    %199 = vmatpush1.msra.mxu0 0.0
    %200 = vmatprep.subr.mxu0 0.0
    %201 = vmatpush1.msra.mxu0 0.0
    %202 = vmatprep.subr.mxu0 0.0
    %203 = vmatpush1.msra.mxu0 0.0
    %204 = vmatprep.subr.mxu0 0.0
    %205 = vmatpush1.msra.mxu0 0.0
    %206 = vmatprep.subr.mxu0 0.0
    %207 = vmatpush1.msra.mxu0 0.0
    %208 = vmatprep.subr.mxu0 0.0
    %209 = vmatpush1.msra.mxu0 0.0
    %210 = vmatprep.subr.mxu0 0.0
    %211 = vmatpush1.msra.mxu0 0.0
    %212 = vmatprep.subr.mxu0 0.0
    %213 = vmatpush1.msra.mxu0 0.0
    %214 = vmatprep.subr.mxu0 0.0
    %215 = vmatpush1.msra.mxu0 0.0
    %216 = vmatprep.subr.mxu0 0.0
    %217 = vmatpush1.msra.mxu0 0.0
    %218 = vmatprep.subr.mxu0 0.0
    %219 = vmatpush1.msra.mxu0 0.0
    %220 = vmatprep.subr.mxu0 0.0
    %221 = vmatpush1.msra.mxu0 0.0
    %222 = vmatprep.subr.mxu0 0.0
    %223 = vmatpush1.msra.mxu0 0.0
    %224 = vmatprep.mubr.f32.mxu0 0.0
    %225 = vmatmul.mubr.f32.gmra.mrb[0].mxu0 %v149
    %v226 = vpop.f32.mrb[0].mxu0
    %v227 = vadd.f32 %v146, %v226
    %v228 = vpop.f32.mrb[0].mxu0
    %229 = vmatprep.mubr.f32.mxu0 0.0
    %230 = vmatmul.mubr.f32.gmra.mrb[0].mxu0 %v152
    %v231 = vpop.f32.mrb[0].mxu0
    %v232 = vadd.f32 %v146, %v231
    %v233 = vpop.f32.mrb[0].mxu0
    %234 = vmatprep.mubr.f32.mxu0 0.0
    %235 = vmatmul.mubr.f32.gmra.mrb[0].mxu0 %v155
    %v236 = vpop.f32.mrb[0].mxu0
    %v237 = vadd.f32 %v146, %v236
    %v238 = vpop.f32.mrb[0].mxu0
    %239 = vmatprep.mubr.f32.mxu0 0.0
    %240 = vmatmul.mubr.f32.gmra.mrb[0].mxu0 %v158
    %v241 = vpop.f32.mrb[0].mxu0
    %v242 = vadd.f32 %v146, %v241
    %v243 = vpop.f32.mrb[0].mxu0
    %244 = vdwg.mxu0
    %v245 = vmax.f32 %v227, 0.0
    %v246 = vmax.f32 %v232, 0.0
    %v247 = vmax.f32 %v237, 0.0
    %v248 = vmax.f32 %v242, 0.0
    %v249 = vrot.slane %v245, 7
    %v250 = vrot.slane %v246, 7
    %v251 = vrot.slane %v247, 7
    %v252 = vrot.slane %v248, 7
    %v253 = vsel %vm104, %v251, %v252
    %v254 = vsel %vm104, %v250, %v251
    %v255 = vsel %vm104, %v249, %v250
    %v256 = vsel %vm104, %v252, %v249
    %v257 = vsel %vm113, 0.0, %v256
    %v258 = vsel %vm114, 0.0, %v255
    %v259 = vsel %vm115, 0.0, %v254
    %v260 = vsel %vm116, 0.0, %v253
    %265 = vrot.lane.b32.xlu0 %v245, 32
    %v266 = vpop.permute.xlu0 %265
    %267 = vrot.lane.b32.xlu0 %v246, 32
    %v268 = vpop.permute.xlu0 %267
    %269 = vrot.lane.b32.xlu0 %v247, 32
    %v270 = vpop.permute.xlu0 %269
    %271 = vrot.lane.b32.xlu0 %v248, 32
    %v272 = vpop.permute.xlu0 %271
    %vm277 = vcmask 261120
    %v278 = vsel %vm277, %v257, %v266
    %v279 = vsel %vm277, %v258, %v268
    %v280 = vsel %vm277, %v259, %v270
    %v281 = vsel %vm277, %v260, %v272
    %v282 = vld [vmem:[%s2] sm:$0xff]
    %v283 = vld [vmem:[%s2 + $0x8] sm:$0xff]
    %v284 = vld [vmem:[%s2 + $0x10] sm:$0xff]
    %v285 = vld [vmem:[%s2 + $0x18] sm:$0xff]
    %v286 = vld [vmem:[%s2 + $0x20] sm:$0xff]
    %v287 = vld [vmem:[%s2 + $0x28] sm:$0xff]
    %v288 = vld [vmem:[%s2 + $0x30] sm:$0xff]
    %v289 = vld [vmem:[%s2 + $0x38] sm:$0xff]
    %v290 = vlaneseq
    %v291 = vshrl.u32 %v290, 7
    %v292 = vsub.s32 1, %v291
    %v293 = vrot.slane %v99, %v292
    %vm294 = vcmask 523264
    %v296 = vsel %vm294, %v278, 0
    %v299 = vsel %vm294, %v279, 0
    %v302 = vsel %vm294, %v280, 0
    %v305 = vsel %vm294, %v281, 0
    %307 = vmatprep.subr.mxu0 0.0
    %308 = vmatpush1.msra.mxu0 %v282
    %309 = vmatprep.subr.mxu0 0.0
    %310 = vmatpush1.msra.mxu0 %v283
    %311 = vmatprep.subr.mxu0 0.0
    %312 = vmatpush1.msra.mxu0 %v284
    %313 = vmatprep.subr.mxu0 0.0
    %314 = vmatpush1.msra.mxu0 %v285
    %315 = vmatprep.subr.mxu0 0.0
    %316 = vmatpush1.msra.mxu0 %v286
    %317 = vmatprep.subr.mxu0 0.0
    %318 = vmatpush1.msra.mxu0 %v287
    %319 = vmatprep.subr.mxu0 0.0
    %320 = vmatpush1.msra.mxu0 %v288
    %321 = vmatprep.subr.mxu0 0.0
    %322 = vmatpush1.msra.mxu0 %v289
    %323 = vmatprep.subr.mxu0 0.0
    %324 = vmatpush1.msra.mxu0 0.0
    %325 = vmatprep.subr.mxu0 0.0
    %326 = vmatpush1.msra.mxu0 0.0
    %327 = vmatprep.subr.mxu0 0.0
    %328 = vmatpush1.msra.mxu0 0.0
    %329 = vmatprep.subr.mxu0 0.0
    %330 = vmatpush1.msra.mxu0 0.0
    %331 = vmatprep.subr.mxu0 0.0
    %332 = vmatpush1.msra.mxu0 0.0
    %333 = vmatprep.subr.mxu0 0.0
    %334 = vmatpush1.msra.mxu0 0.0
    %335 = vmatprep.subr.mxu0 0.0
    %336 = vmatpush1.msra.mxu0 0.0
    %337 = vmatprep.subr.mxu0 0.0
    %338 = vmatpush1.msra.mxu0 0.0
    %339 = vmatprep.subr.mxu0 0.0
    %340 = vmatpush1.msra.mxu0 0.0
    %341 = vmatprep.subr.mxu0 0.0
    %342 = vmatpush1.msra.mxu0 0.0
    %343 = vmatprep.subr.mxu0 0.0
    %344 = vmatpush1.msra.mxu0 0.0
    %345 = vmatprep.subr.mxu0 0.0
    %346 = vmatpush1.msra.mxu0 0.0
    %347 = vmatprep.subr.mxu0 0.0
    %348 = vmatpush1.msra.mxu0 0.0
    %349 = vmatprep.subr.mxu0 0.0
    %350 = vmatpush1.msra.mxu0 0.0
    %351 = vmatprep.subr.mxu0 0.0
    %352 = vmatpush1.msra.mxu0 0.0
    %353 = vmatprep.subr.mxu0 0.0
    %354 = vmatpush1.msra.mxu0 0.0
    %355 = vmatprep.subr.mxu0 0.0
    %356 = vmatpush1.msra.mxu0 0.0
    %357 = vmatprep.subr.mxu0 0.0
    %358 = vmatpush1.msra.mxu0 0.0
    %359 = vmatprep.subr.mxu0 0.0
    %360 = vmatpush1.msra.mxu0 0.0
    %361 = vmatprep.subr.mxu0 0.0
    %362 = vmatpush1.msra.mxu0 0.0
    %363 = vmatprep.subr.mxu0 0.0
    %364 = vmatpush1.msra.mxu0 0.0
    %365 = vmatprep.subr.mxu0 0.0
    %366 = vmatpush1.msra.mxu0 0.0
    %367 = vmatprep.subr.mxu0 0.0
    %368 = vmatpush1.msra.mxu0 0.0
    %369 = vmatprep.subr.mxu0 0.0
    %370 = vmatpush1.msra.mxu0 0.0
    %371 = vmatprep.mubr.f32.mxu0 0.0
    %372 = vmatmul.mubr.f32.gmra.mrb[0].mxu0 %v296
    %v373 = vpop.f32.mrb[0].mxu0
    %v374 = vadd.f32 %v293, %v373
    %v375 = vpop.f32.mrb[0].mxu0
    %376 = vmatprep.mubr.f32.mxu0 0.0
    %377 = vmatmul.mubr.f32.gmra.mrb[0].mxu0 %v299
    %v378 = vpop.f32.mrb[0].mxu0
    %v379 = vadd.f32 %v293, %v378
    %v380 = vpop.f32.mrb[0].mxu0
    %381 = vmatprep.mubr.f32.mxu0 0.0
    %382 = vmatmul.mubr.f32.gmra.mrb[0].mxu0 %v302
    %v383 = vpop.f32.mrb[0].mxu0
    %v384 = vadd.f32 %v293, %v383
    %v385 = vpop.f32.mrb[0].mxu0
    %386 = vmatprep.mubr.f32.mxu0 0.0
    %387 = vmatmul.mubr.f32.gmra.mrb[0].mxu0 %v305
    %v388 = vpop.f32.mrb[0].mxu0
    %v389 = vadd.f32 %v293, %v388
    %v390 = vpop.f32.mrb[0].mxu0
    %391 = vdwg.mxu0
    %v392 = vmax.f32 %v374, 0.0
    %v393 = vmax.f32 %v379, 0.0
    %v394 = vmax.f32 %v384, 0.0
    %v395 = vmax.f32 %v389, 0.0
    %v396 = vrot.slane %v392, 7
    %v397 = vrot.slane %v393, 7
    %v398 = vrot.slane %v394, 7
    %v399 = vrot.slane %v395, 7
    %v400 = vsel %vm104, %v398, %v399
    %v401 = vsel %vm104, %v397, %v398
    %v402 = vsel %vm104, %v396, %v397
    %v403 = vsel %vm104, %v399, %v396
    %v404 = vsel %vm113, 0.0, %v403
    %v405 = vsel %vm114, 0.0, %v402
    %v406 = vsel %vm115, 0.0, %v401
    %v407 = vsel %vm116, 0.0, %v400
    %412 = vrot.lane.b32.xlu0 %v392, 32
    %v413 = vpop.permute.xlu0 %412
    %414 = vrot.lane.b32.xlu0 %v393, 32
    %v415 = vpop.permute.xlu0 %414
    %416 = vrot.lane.b32.xlu0 %v394, 32
    %v417 = vpop.permute.xlu0 %416
    %418 = vrot.lane.b32.xlu0 %v395, 32
    %v419 = vpop.permute.xlu0 %418
    %v424 = vsel %vm277, %v404, %v413
    %v425 = vsel %vm277, %v405, %v415
    %v426 = vsel %vm277, %v406, %v417
    %v427 = vsel %vm277, %v407, %v419
    %v428 = vld [vmem:[#allocation2] sm:$0xff]
    %v429 = vld [vmem:[#allocation2 + $0x8] sm:$0xff]
    %v430 = vld [vmem:[#allocation2 + $0x10] sm:$0xff]
    %v431 = vld [vmem:[#allocation2 + $0x18] sm:$0xff]
    %v432 = vld [vmem:[#allocation2 + $0x20] sm:$0xff]
    %v433 = vld [vmem:[#allocation2 + $0x28] sm:$0xff]
    %v434 = vld [vmem:[#allocation2 + $0x30] sm:$0xff]
    %v435 = vld [vmem:[#allocation2 + $0x38] sm:$0xff]
    %v436 = vlaneseq
    %v437 = vshrl.u32 %v436, 7
    %v438 = vsub.s32 2, %v437
    %v439 = vrot.slane %v99, %v438
    %v441 = vsel %vm294, %v424, 0
    %v444 = vsel %vm294, %v425, 0
    %v447 = vsel %vm294, %v426, 0
    %v450 = vsel %vm294, %v427, 0
    %452 = vmatprep.subr.mxu0 0.0
    %453 = vmatpush1.msra.mxu0 %v428
    %454 = vmatprep.subr.mxu0 0.0
    %455 = vmatpush1.msra.mxu0 %v429
    %456 = vmatprep.subr.mxu0 0.0
    %457 = vmatpush1.msra.mxu0 %v430
    %458 = vmatprep.subr.mxu0 0.0
    %459 = vmatpush1.msra.mxu0 %v431
    %460 = vmatprep.subr.mxu0 0.0
    %461 = vmatpush1.msra.mxu0 %v432
    %462 = vmatprep.subr.mxu0 0.0
    %463 = vmatpush1.msra.mxu0 %v433
    %464 = vmatprep.subr.mxu0 0.0
    %465 = vmatpush1.msra.mxu0 %v434
    %466 = vmatprep.subr.mxu0 0.0
    %467 = vmatpush1.msra.mxu0 %v435
    %468 = vmatprep.subr.mxu0 0.0
    %469 = vmatpush1.msra.mxu0 0.0
    %470 = vmatprep.subr.mxu0 0.0
    %471 = vmatpush1.msra.mxu0 0.0
    %472 = vmatprep.subr.mxu0 0.0
    %473 = vmatpush1.msra.mxu0 0.0
    %474 = vmatprep.subr.mxu0 0.0
    %475 = vmatpush1.msra.mxu0 0.0
    %476 = vmatprep.subr.mxu0 0.0
    %477 = vmatpush1.msra.mxu0 0.0
    %478 = vmatprep.subr.mxu0 0.0
    %479 = vmatpush1.msra.mxu0 0.0
    %480 = vmatprep.subr.mxu0 0.0
    %481 = vmatpush1.msra.mxu0 0.0
    %482 = vmatprep.subr.mxu0 0.0
    %483 = vmatpush1.msra.mxu0 0.0
    %484 = vmatprep.subr.mxu0 0.0
    %485 = vmatpush1.msra.mxu0 0.0
    %486 = vmatprep.subr.mxu0 0.0
    %487 = vmatpush1.msra.mxu0 0.0
    %488 = vmatprep.subr.mxu0 0.0
    %489 = vmatpush1.msra.mxu0 0.0
    %490 = vmatprep.subr.mxu0 0.0
    %491 = vmatpush1.msra.mxu0 0.0
    %492 = vmatprep.subr.mxu0 0.0
    %493 = vmatpush1.msra.mxu0 0.0
    %494 = vmatprep.subr.mxu0 0.0
    %495 = vmatpush1.msra.mxu0 0.0
    %496 = vmatprep.subr.mxu0 0.0
    %497 = vmatpush1.msra.mxu0 0.0
    %498 = vmatprep.subr.mxu0 0.0
    %499 = vmatpush1.msra.mxu0 0.0
    %500 = vmatprep.subr.mxu0 0.0
    %501 = vmatpush1.msra.mxu0 0.0
    %502 = vmatprep.subr.mxu0 0.0
    %503 = vmatpush1.msra.mxu0 0.0
    %504 = vmatprep.subr.mxu0 0.0
    %505 = vmatpush1.msra.mxu0 0.0
    %506 = vmatprep.subr.mxu0 0.0
    %507 = vmatpush1.msra.mxu0 0.0
    %508 = vmatprep.subr.mxu0 0.0
    %509 = vmatpush1.msra.mxu0 0.0
    %510 = vmatprep.subr.mxu0 0.0
    %511 = vmatpush1.msra.mxu0 0.0
    %512 = vmatprep.subr.mxu0 0.0
    %513 = vmatpush1.msra.mxu0 0.0
    %514 = vmatprep.subr.mxu0 0.0
    %515 = vmatpush1.msra.mxu0 0.0
    %516 = vmatprep.mubr.f32.mxu0 0.0
    %517 = vmatmul.mubr.f32.gmra.mrb[0].mxu0 %v441
    %v518 = vpop.f32.mrb[0].mxu0
    %v519 = vadd.f32 %v439, %v518
    %v520 = vpop.f32.mrb[0].mxu0
    %521 = vmatprep.mubr.f32.mxu0 0.0
    %522 = vmatmul.mubr.f32.gmra.mrb[0].mxu0 %v444
    %v523 = vpop.f32.mrb[0].mxu0
    %v524 = vadd.f32 %v439, %v523
    %v525 = vpop.f32.mrb[0].mxu0
    %526 = vmatprep.mubr.f32.mxu0 0.0
    %527 = vmatmul.mubr.f32.gmra.mrb[0].mxu0 %v447
    %v528 = vpop.f32.mrb[0].mxu0
    %v529 = vadd.f32 %v439, %v528
    %v530 = vpop.f32.mrb[0].mxu0
    %531 = vmatprep.mubr.f32.mxu0 0.0
    %532 = vmatmul.mubr.f32.gmra.mrb[0].mxu0 %v450
    %v533 = vpop.f32.mrb[0].mxu0
    %v534 = vadd.f32 %v439, %v533
    %v535 = vpop.f32.mrb[0].mxu0
    %536 = vdwg.mxu0
    %v537 = vmax.f32 %v519, 0.0
    %v538 = vmax.f32 %v524, 0.0
    %v539 = vmax.f32 %v529, 0.0
    %v540 = vmax.f32 %v534, 0.0
    %v541 = vrot.slane %v537, 7
    %v542 = vrot.slane %v538, 7
    %v543 = vrot.slane %v539, 7
    %v544 = vrot.slane %v540, 7
    %v545 = vsel %vm104, %v543, %v544
    %v546 = vsel %vm104, %v542, %v543
    %v547 = vsel %vm104, %v541, %v542
    %v548 = vsel %vm104, %v544, %v541
    %v549 = vsel %vm113, 0.0, %v548
    %v550 = vsel %vm114, 0.0, %v547
    %v551 = vsel %vm115, 0.0, %v546
    %v552 = vsel %vm116, 0.0, %v545
    %557 = vrot.lane.b32.xlu0 %v537, 64
    %v558 = vpop.permute.xlu0 %557
    %559 = vrot.lane.b32.xlu0 %v538, 64
    %v560 = vpop.permute.xlu0 %559
    %561 = vrot.lane.b32.xlu0 %v539, 64
    %v562 = vpop.permute.xlu0 %561
    %563 = vrot.lane.b32.xlu0 %v540, 64
    %v564 = vpop.permute.xlu0 %563
    %v569 = vsel %vm294, %v549, %v558
    %v570 = vsel %vm294, %v550, %v560
    %v571 = vsel %vm294, %v551, %v562
    %v572 = vsel %vm294, %v552, %v564
    %v573 = vld [vmem:[%s4] sm:$0xff]
    %v574 = vld [vmem:[%s4 + $0x8] sm:$0xff]
    %v575 = vld [vmem:[%s4 + $0x10] sm:$0xff]
    %v576 = vld [vmem:[%s4 + $0x18] sm:$0xff]
    %v577 = vld [vmem:[%s4 + $0x20] sm:$0xff]
    %v578 = vld [vmem:[%s4 + $0x28] sm:$0xff]
    %v579 = vld [vmem:[%s4 + $0x30] sm:$0xff]
    %v580 = vld [vmem:[%s4 + $0x38] sm:$0xff]
    %v581 = vld [vmem:[%s4 + $0x40] sm:$0xff]
    %v582 = vld [vmem:[%s4 + $0x48] sm:$0xff]
    %v583 = vld [vmem:[%s4 + $0x50] sm:$0xff]
    %v584 = vld [vmem:[%s4 + $0x58] sm:$0xff]
    %v585 = vld [vmem:[%s4 + $0x60] sm:$0xff]
    %v586 = vld [vmem:[%s4 + $0x68] sm:$0xff]
    %v587 = vld [vmem:[%s4 + $0x70] sm:$0xff]
    %v588 = vld [vmem:[%s4 + $0x78] sm:$0xff]
    %v589 = vlaneseq
    %v590 = vshrl.u32 %v589, 7
    %v591 = vsub.s32 3, %v590
    %v592 = vrot.slane %v99, %v591
    %593 = vmatprep.subr.mxu0 0.0
    %594 = vmatpush1.msra.mxu0 %v573
    %595 = vmatprep.subr.mxu0 0.0
    %596 = vmatpush1.msra.mxu0 %v574
    %597 = vmatprep.subr.mxu0 0.0
    %598 = vmatpush1.msra.mxu0 %v575
    %599 = vmatprep.subr.mxu0 0.0
    %600 = vmatpush1.msra.mxu0 %v576
    %601 = vmatprep.subr.mxu0 0.0
    %602 = vmatpush1.msra.mxu0 %v577
    %603 = vmatprep.subr.mxu0 0.0
    %604 = vmatpush1.msra.mxu0 %v578
    %605 = vmatprep.subr.mxu0 0.0
    %606 = vmatpush1.msra.mxu0 %v579
    %607 = vmatprep.subr.mxu0 0.0
    %608 = vmatpush1.msra.mxu0 %v580
    %609 = vmatprep.subr.mxu0 0.0
    %610 = vmatpush1.msra.mxu0 %v581
    %611 = vmatprep.subr.mxu0 0.0
    %612 = vmatpush1.msra.mxu0 %v582
    %613 = vmatprep.subr.mxu0 0.0
    %614 = vmatpush1.msra.mxu0 %v583
    %615 = vmatprep.subr.mxu0 0.0
    %616 = vmatpush1.msra.mxu0 %v584
    %617 = vmatprep.subr.mxu0 0.0
    %618 = vmatpush1.msra.mxu0 %v585
    %619 = vmatprep.subr.mxu0 0.0
    %620 = vmatpush1.msra.mxu0 %v586
    %621 = vmatprep.subr.mxu0 0.0
    %622 = vmatpush1.msra.mxu0 %v587
    %623 = vmatprep.subr.mxu0 0.0
    %624 = vmatpush1.msra.mxu0 %v588
    %625 = vmatprep.subr.mxu0 0.0
    %626 = vmatpush1.msra.mxu0 0.0
    %627 = vmatprep.subr.mxu0 0.0
    %628 = vmatpush1.msra.mxu0 0.0
    %629 = vmatprep.subr.mxu0 0.0
    %630 = vmatpush1.msra.mxu0 0.0
    %631 = vmatprep.subr.mxu0 0.0
    %632 = vmatpush1.msra.mxu0 0.0
    %633 = vmatprep.subr.mxu0 0.0
    %634 = vmatpush1.msra.mxu0 0.0
    %635 = vmatprep.subr.mxu0 0.0
    %636 = vmatpush1.msra.mxu0 0.0
    %637 = vmatprep.subr.mxu0 0.0
    %638 = vmatpush1.msra.mxu0 0.0
    %639 = vmatprep.subr.mxu0 0.0
    %640 = vmatpush1.msra.mxu0 0.0
    %641 = vmatprep.subr.mxu0 0.0
    %642 = vmatpush1.msra.mxu0 0.0
    %643 = vmatprep.subr.mxu0 0.0
    %644 = vmatpush1.msra.mxu0 0.0
    %645 = vmatprep.subr.mxu0 0.0
    %646 = vmatpush1.msra.mxu0 0.0
    %647 = vmatprep.subr.mxu0 0.0
    %648 = vmatpush1.msra.mxu0 0.0
    %649 = vmatprep.subr.mxu0 0.0
    %650 = vmatpush1.msra.mxu0 0.0
    %651 = vmatprep.subr.mxu0 0.0
    %652 = vmatpush1.msra.mxu0 0.0
    %653 = vmatprep.subr.mxu0 0.0
    %654 = vmatpush1.msra.mxu0 0.0
    %655 = vmatprep.subr.mxu0 0.0
    %656 = vmatpush1.msra.mxu0 0.0
    %657 = vmatprep.mubr.f32.mxu0 0.0
    %658 = vmatmul.mubr.f32.gmra.mrb[0].mxu0 %v569
    %v659 = vpop.f32.mrb[0].mxu0
    %v660 = vadd.f32 %v592, %v659
    %v661 = vpop.f32.mrb[0].mxu0
    %662 = vmatprep.mubr.f32.mxu0 0.0
    %663 = vmatmul.mubr.f32.gmra.mrb[0].mxu0 %v570
    %v664 = vpop.f32.mrb[0].mxu0
    %v665 = vadd.f32 %v592, %v664
    %v666 = vpop.f32.mrb[0].mxu0
    %667 = vmatprep.mubr.f32.mxu0 0.0
    %668 = vmatmul.mubr.f32.gmra.mrb[0].mxu0 %v571
    %v669 = vpop.f32.mrb[0].mxu0
    %v670 = vadd.f32 %v592, %v669
    %v671 = vpop.f32.mrb[0].mxu0
    %672 = vmatprep.mubr.f32.mxu0 0.0
    %673 = vmatmul.mubr.f32.gmra.mrb[0].mxu0 %v572
    %v674 = vpop.f32.mrb[0].mxu0
    %v675 = vadd.f32 %v592, %v674
    %v676 = vpop.f32.mrb[0].mxu0
    %677 = vdwg.mxu0
    %678 = vst [vmem:[#allocation5] sm:$0xff] %v660
    %679 = vst [vmem:[#allocation5 + $0x8] sm:$0xff] %v665
    %680 = vst [vmem:[#allocation5 + $0x10] sm:$0xff] %v670
    %681 = vst [vmem:[#allocation5 + $0x18] sm:$0xff] %v675
    // Predicated region
    $region30: #{tpu_custom_call.1} parent=1 // pred_check
      _
    $region31: #{tpu_custom_call.1} parent=1 // pred_check_branch
      %683 = sbr.rel (0) target = $region33
    $region32: #{tpu_custom_call.1} parent=1 // pred_region
      %s685 = ssub.s32 512, 512
      %686 = vsyncadd [#allocation4], %s685
      %s687 = sshll.u32 [#allocation5], 4
      %s688 = int_to_ptr.vmem [resolvable:$true] %s687
      %693 = dma.vmem_to_hbm [thread:$0]  %s688, 512, %s6, [#allocation4], 128, 128, 8
    $region33: #{tpu_custom_call.1} parent=1 // pred_fallthru
      _
    // Predicated region
    $region34: #{tpu_custom_call.1} parent=1 // pred_check
      _
    $region35: #{tpu_custom_call.1} parent=1 // pred_check_branch
      %695 = sbr.rel (0) target = $region37
    $region36: #{tpu_custom_call.1} parent=1 // pred_region
      %696 = dma.done [#allocation4], 512
    $region37: #{tpu_custom_call.1} parent=1 // pred_fallthru
      _
    %697 = vsyncpa [#allocation3], 1
    %698 = vsyncpa [#allocation4], 1

</llo_original>
